<compile_context>
chip_gen: v6e
topology: v6e:2x2x1
jax: 0.10.0
libtpu: 0.0.40
codegen_flags: <defaults>
</compile_context>

<pallas_src>
import functools

import jax
import jax.numpy as jnp
from jax import lax
from jax.experimental import pallas as pl
from jax.experimental.pallas import tpu as pltpu


def _round_up(n, m):
    return ((n + m - 1) // m) * m


def _rbf_kernel(x_ref, y_ref, nxs_ref, nys_ref, o_ref, *, two_c):
    """One (tm, tn) output tile.

    x_ref:   (tm, d)    rows of x for this tile
    y_ref:   (tn, d)    rows of y for this tile
    nxs_ref: (tm, 1)    c * ||x_i||^2   (pre-scaled in wrapper)
    nys_ref: (1, tn)    c * ||y_j||^2   (pre-scaled in wrapper)
    o_ref:   (tm, tn)   gram tile
    """
    # MXU: contract the feature dim of both operands directly (no y.T).
    xy = lax.dot_general(
        x_ref[...], y_ref[...],
        dimension_numbers=(((1,), (1,)), ((), ())),
        preferred_element_type=jnp.float32,
    )  # (tm, tn) f32

    # gram = exp(-(||x||^2 - 2<x,y> + ||y||^2) / (2 sigma^2))
    #      = exp(2c*<x,y> - c*||x||^2 - c*||y||^2),  c = 1/(2 sigma^2)
    o_ref[...] = jnp.exp(two_c * xy - nxs_ref[...] - nys_ref[...])


def rbf_pallas(x, y, sigma, *, tm_max=256, tn_max=256):
    """Evaluate the RBF gram matrix with a tiled Pallas TPU kernel.

    x: (nx, d), y: (ny, d)  ->  gram: (nx, ny) float32
    """
    nx, d = x.shape
    ny, dy = y.shape
    assert d == dy, "feature dims of x and y must match"

    c = 1.0 / (2.0 * float(sigma) ** 2)

    # Tile sizes: sublane-aligned rows for x, lane-dense (multiple-of-128)
    # columns for the output. Small problems collapse to a single tile.
    tm = min(tm_max, _round_up(nx, 8))
    tn = min(tn_max, _round_up(ny, 128))
    nx_p = _round_up(nx, tm)
    ny_p = _round_up(ny, tn)

    x_p = x if nx_p == nx else jnp.pad(x, ((0, nx_p - nx), (0, 0)))
    y_p = y if ny_p == ny else jnp.pad(y, ((0, ny_p - ny), (0, 0)))

    # Row norms hoisted out of the kernel, pre-scaled by c, laid out so the
    # kernel never transposes: (nx_p, 1) and (1, ny_p).
    xf = x_p.astype(jnp.float32)
    yf = y_p.astype(jnp.float32)
    norm_x_scaled = (c * jnp.sum(xf * xf, axis=1))[:, None]   # (nx_p, 1)
    norm_y_scaled = (c * jnp.sum(yf * yf, axis=1))[None, :]   # (1, ny_p)

    kernel = functools.partial(_rbf_kernel, two_c=2.0 * c)

    grid = (nx_p // tm, ny_p // tn)

    # TODO(synk): for very large d, add a trailing K grid axis with a VMEM f32
    # accumulator (pl.when init/finalize) instead of a full-d block per tile.
    out = pl.pallas_call(
        kernel,
        out_shape=jax.ShapeDtypeStruct((nx_p, ny_p), jnp.float32),
        grid_spec=pltpu.PrefetchScalarGridSpec(
            num_scalar_prefetch=0,
            grid=grid,
            in_specs=[
                pl.BlockSpec((tm, d), lambda i, j: (i, 0)),
                pl.BlockSpec((tn, d), lambda i, j: (j, 0)),
                pl.BlockSpec((tm, 1), lambda i, j: (i, 0)),
                pl.BlockSpec((1, tn), lambda i, j: (0, j)),
            ],
            out_specs=pl.BlockSpec((tm, tn), lambda i, j: (i, j)),
        ),
        compiler_params=pltpu.CompilerParams(
            # Both output axes are independent -> shardable across TensorCores.
            dimension_semantics=("parallel", "parallel"),
        ),
    )(x_p, y_p, norm_x_scaled, norm_y_scaled)

    return out[:nx, :ny]


def rbf_reference(x, y, sigma):
    """Pure-JAX reference matching the PyTorch module."""
    norm_x = jnp.sum(x * x, axis=1)[:, None]      # (nx, 1)
    norm_y = jnp.sum(y * y, axis=1)[None, :]      # (1, ny)
    sq = norm_x - 2.0 * (x @ y.T) + norm_y
    return jnp.exp(-sq / (2.0 * sigma ** 2))


if __name__ == "__main__":
    # The RBF module's only "parameter" is the scalar bandwidth.
    sigma = 1.5

    key = jax.random.PRNGKey(0)
    kx, ky = jax.random.split(key)
    # Small shapes: nx=64 rows, ny=48 rows, feature dim d=32.
    x = jax.random.normal(kx, (64, 32), dtype=jnp.float32)
    y = jax.random.normal(ky, (48, 32), dtype=jnp.float32)

    gram = rbf_pallas(x, y, sigma)
    gram = jax.block_until_ready(gram)

    ref = rbf_reference(x, y, sigma)
    assert gram.shape == (64, 48)
    assert jnp.allclose(gram, ref, atol=1e-5, rtol=1e-5), "mismatch vs reference"

    print("KERNEL_OK")
</pallas_src>

<mosaic_0001>
module attributes {stable_mosaic.version = 11 : i64} {
  func.func @_rbf_kernel(%arg0: i32, %arg1: i32, %arg2: memref<64x32xf32, #tpu.memory_space<vmem>>, %arg3: memref<128x32xf32, #tpu.memory_space<vmem>>, %arg4: memref<64x1xf32, #tpu.memory_space<vmem>>, %arg5: memref<1x128xf32, #tpu.memory_space<vmem>>, %arg6: memref<64x128xf32, #tpu.memory_space<vmem>>) attributes {dimension_semantics = [#tpu.dimension_semantics<parallel>, #tpu.dimension_semantics<parallel>], iteration_bounds = array<i64: 1, 1>, scalar_prefetch = 0 : i64, scratch_operands = 0 : i64, tpu.core_type = #tpu.core_type<tc>, window_params = [{transform_indices = @transform_0, window_bounds = array<i64: 64, 32>}, {transform_indices = @transform_1, window_bounds = array<i64: 128, 32>}, {transform_indices = @transform_2, window_bounds = array<i64: 64, 1>}, {transform_indices = @transform_3, window_bounds = array<i64: 1, 128>}, {transform_indices = @transform_4, window_bounds = array<i64: 64, 128>}]} {
    %c0 = arith.constant 0 : index
    %c0_0 = arith.constant 0 : index
    %0 = vector.load %arg2[%c0, %c0_0] : memref<64x32xf32, #tpu.memory_space<vmem>>, vector<64x32xf32>
    %c0_1 = arith.constant 0 : index
    %c0_2 = arith.constant 0 : index
    %1 = vector.load %arg3[%c0_1, %c0_2] : memref<128x32xf32, #tpu.memory_space<vmem>>, vector<128x32xf32>
    %cst = arith.constant dense<0.000000e+00> : vector<64x128xf32>
    %2 = tpu.matmul %0, %1, %cst {dimension_numbers = #tpu.dot_dimension_numbers<[1], [1], [0], [0], [0, 0, 1, 0], [], []>} : vector<64x32xf32>, vector<128x32xf32>, vector<64x128xf32> -> vector<64x128xf32>
    %cst_3 = arith.constant 0.444444448 : f32
    %3 = vector.broadcast %cst_3 : f32 to vector<64x128xf32>
    %4 = arith.mulf %3, %2 : vector<64x128xf32>
    %c0_4 = arith.constant 0 : index
    %c0_5 = arith.constant 0 : index
    %5 = vector.load %arg4[%c0_4, %c0_5] : memref<64x1xf32, #tpu.memory_space<vmem>>, vector<64x1xf32>
    %6 = vector.broadcast %5 : vector<64x1xf32> to vector<64x128xf32>
    %7 = arith.subf %4, %6 : vector<64x128xf32>
    %c0_6 = arith.constant 0 : index
    %c0_7 = arith.constant 0 : index
    %8 = vector.load %arg5[%c0_6, %c0_7] : memref<1x128xf32, #tpu.memory_space<vmem>>, vector<1x128xf32>
    %9 = vector.broadcast %8 : vector<1x128xf32> to vector<64x128xf32>
    %10 = arith.subf %7, %9 : vector<64x128xf32>
    %11 = math.exp %10 : vector<64x128xf32>
    %c0_8 = arith.constant 0 : index
    %c0_9 = arith.constant 0 : index
    %12 = vector.load %arg6[%c0_8, %c0_9] : memref<64x128xf32, #tpu.memory_space<vmem>>, vector<64x128xf32>
    tpu.vector_store %arg6[%c0_8, %c0_9], %11 {strides = array<i32>} : memref<64x128xf32, #tpu.memory_space<vmem>>, vector<64x128xf32>,
    return
  }
  func.func @transform_0(%arg0: i32, %arg1: i32) -> (i32, i32) {
    %c0_i32 = arith.constant 0 : i32
    %c0_i32_0 = arith.constant 0 : i32
    return %arg0, %c0_i32 : i32, i32
  }
  func.func @transform_1(%arg0: i32, %arg1: i32) -> (i32, i32) {
    %c0_i32 = arith.constant 0 : i32
    %c0_i32_0 = arith.constant 0 : i32
    return %arg1, %c0_i32 : i32, i32
  }
  func.func @transform_2(%arg0: i32, %arg1: i32) -> (i32, i32) {
    %c0_i32 = arith.constant 0 : i32
    %c0_i32_0 = arith.constant 0 : i32
    return %arg0, %c0_i32 : i32, i32
  }
  func.func @transform_3(%arg0: i32, %arg1: i32) -> (i32, i32) {
    %c0_i32 = arith.constant 0 : i32
    %c0_i32_0 = arith.constant 0 : i32
    return %c0_i32, %arg1 : i32, i32
  }
  func.func @transform_4(%arg0: i32, %arg1: i32) -> (i32, i32) {
    %c0_i32 = arith.constant 0 : i32
    return %arg0, %arg1 : i32, i32
  }
}

</mosaic_0001>

<llo_original>
// kernel: tpu_custom_call.1
$region0: #{tpu_custom_call.1}
  #allocation0 [shape = 'u32[]', space=smem, size = 0x4, offset = 0x4, fixed_abs, tag = 'smem constant byte address 0x4 - core index']
  #allocation1 [shape = 'u32[144,128]{1,0:T(1,128)}', space=vmem, size = 0x12000, scoped, tag = 'internal scratch']
  %s0 = inlined_call_operand.vmem [shape: f32[64,32], index: 0, kind: input, shape index: {}]
  %s1 = inlined_call_operand.vmem [shape: f32[128,32], index: 1, kind: input, shape index: {}]
  %s2 = inlined_call_operand.vmem [shape: f32[64,1], index: 2, kind: input, shape index: {}]
  %s3 = inlined_call_operand.vmem [shape: f32[1,128], index: 3, kind: input, shape index: {}]
  %s4 = inlined_call_operand.hbm [shape: f32[64,128], index: 4, kind: output, shape index: {}]
  %s5 = sld [smem:[#allocation0]]
  $region26: #{tpu_custom_call.1} parent=0
    _
  %s7 = ssub.s32 1, %s5
  %s8 = scalar_select 0, %s7, %s5
  $region1: #{tpu_custom_call.1} parent=0
    #allocation2 [shape = 'u8[32768]{0}', space=vmem, size = 0x8000, scoped, tag = 'output window, operand 0, single buffered']
    #allocation3 [shape = 's32[1]{0}', space=sflag, size = 0x4, scoped, tag = 'scoped memory for tpu_custom_call.1']
    %9 = vsyncpa [#allocation3], 0
    // Predicated region
    $region2: #{tpu_custom_call.1} parent=1 // pred_check
      _
    $region3: #{tpu_custom_call.1} parent=1 // pred_check_branch
      %11 = sbr.rel (0) target = $region5
    $region4: #{tpu_custom_call.1} parent=1 // pred_region
      _
    $region5: #{tpu_custom_call.1} parent=1 // pred_fallthru
      _
    // Predicated region
    $region6: #{tpu_custom_call.1} parent=1 // pred_check
      _
    $region7: #{tpu_custom_call.1} parent=1 // pred_check_branch
      %13 = sbr.rel (0) target = $region9
    $region8: #{tpu_custom_call.1} parent=1 // pred_region
      _
    $region9: #{tpu_custom_call.1} parent=1 // pred_fallthru
      _
    // Predicated region
    $region10: #{tpu_custom_call.1} parent=1 // pred_check
      _
    $region11: #{tpu_custom_call.1} parent=1 // pred_check_branch
      %15 = sbr.rel (0) target = $region13
    $region12: #{tpu_custom_call.1} parent=1 // pred_region
      _
    $region13: #{tpu_custom_call.1} parent=1 // pred_fallthru
      _
    // Predicated region
    $region14: #{tpu_custom_call.1} parent=1 // pred_check
      _
    $region15: #{tpu_custom_call.1} parent=1 // pred_check_branch
      %17 = sbr.rel (0) target = $region17
    $region16: #{tpu_custom_call.1} parent=1 // pred_region
      _
    $region17: #{tpu_custom_call.1} parent=1 // pred_fallthru
      _
    %v18 = vld [vmem:[%s0] sm:$0xff]
    %v19 = vld [vmem:[%s0 + $0x8] sm:$0xff]
    %v20 = vld [vmem:[%s0 + $0x10] sm:$0xff]
    %v21 = vld [vmem:[%s0 + $0x18] sm:$0xff]
    %v22 = vld [vmem:[%s0 + $0x20] sm:$0xff]
    %v23 = vld [vmem:[%s0 + $0x28] sm:$0xff]
    %v24 = vld [vmem:[%s0 + $0x30] sm:$0xff]
    %v25 = vld [vmem:[%s0 + $0x38] sm:$0xff]
    %v26 = vld [vmem:[%s1] sm:$0xff]
    %v27 = vld [vmem:[%s1 + $0x8] sm:$0xff]
    %v28 = vld [vmem:[%s1 + $0x10] sm:$0xff]
    %v29 = vld [vmem:[%s1 + $0x18] sm:$0xff]
    %v30 = vld [vmem:[%s1 + $0x20] sm:$0xff]
    %v31 = vld [vmem:[%s1 + $0x28] sm:$0xff]
    %v32 = vld [vmem:[%s1 + $0x30] sm:$0xff]
    %v33 = vld [vmem:[%s1 + $0x38] sm:$0xff]
    %v34 = vld [vmem:[%s1 + $0x40] sm:$0xff]
    %v35 = vld [vmem:[%s1 + $0x48] sm:$0xff]
    %v36 = vld [vmem:[%s1 + $0x50] sm:$0xff]
    %v37 = vld [vmem:[%s1 + $0x58] sm:$0xff]
    %v38 = vld [vmem:[%s1 + $0x60] sm:$0xff]
    %v39 = vld [vmem:[%s1 + $0x68] sm:$0xff]
    %v40 = vld [vmem:[%s1 + $0x70] sm:$0xff]
    %v41 = vld [vmem:[%s1 + $0x78] sm:$0xff]
    %vm42 = vcmask 261120
    %v44 = vsel %vm42, %v18, 0
    %v47 = vsel %vm42, %v19, 0
    %v50 = vsel %vm42, %v20, 0
    %v53 = vsel %vm42, %v21, 0
    %v56 = vsel %vm42, %v22, 0
    %v59 = vsel %vm42, %v23, 0
    %v62 = vsel %vm42, %v24, 0
    %v65 = vsel %vm42, %v25, 0
    %v68 = vsel %vm42, %v26, 0
    %v71 = vsel %vm42, %v27, 0
    %v74 = vsel %vm42, %v28, 0
    %v77 = vsel %vm42, %v29, 0
    %v80 = vsel %vm42, %v30, 0
    %v83 = vsel %vm42, %v31, 0
    %v86 = vsel %vm42, %v32, 0
    %v89 = vsel %vm42, %v33, 0
    %v92 = vsel %vm42, %v34, 0
    %v95 = vsel %vm42, %v35, 0
    %v98 = vsel %vm42, %v36, 0
    %v101 = vsel %vm42, %v37, 0
    %v104 = vsel %vm42, %v38, 0
    %v107 = vsel %vm42, %v39, 0
    %v110 = vsel %vm42, %v40, 0
    %v113 = vsel %vm42, %v41, 0
    %115 = vmatprep.subr.mxu0 0.0
    %116 = vmatpush1.xpose.msra.mxu0 %v113
    %117 = vmatprep.subr.mxu0 0.0
    %118 = vmatpush1.xpose.msra.mxu0 %v110
    %119 = vmatprep.subr.mxu0 0.0
    %120 = vmatpush1.xpose.msra.mxu0 %v107
    %121 = vmatprep.subr.mxu0 0.0
    %122 = vmatpush1.xpose.msra.mxu0 %v104
    %123 = vmatprep.subr.mxu0 0.0
    %124 = vmatpush1.xpose.msra.mxu0 %v101
    %125 = vmatprep.subr.mxu0 0.0
    %126 = vmatpush1.xpose.msra.mxu0 %v98
    %127 = vmatprep.subr.mxu0 0.0
    %128 = vmatpush1.xpose.msra.mxu0 %v95
    %129 = vmatprep.subr.mxu0 0.0
    %130 = vmatpush1.xpose.msra.mxu0 %v92
    %131 = vmatprep.subr.mxu0 0.0
    %132 = vmatpush1.xpose.msra.mxu0 %v89
    %133 = vmatprep.subr.mxu0 0.0
    %134 = vmatpush1.xpose.msra.mxu0 %v86
    %135 = vmatprep.subr.mxu0 0.0
    %136 = vmatpush1.xpose.msra.mxu0 %v83
    %137 = vmatprep.subr.mxu0 0.0
    %138 = vmatpush1.xpose.msra.mxu0 %v80
    %139 = vmatprep.subr.mxu0 0.0
    %140 = vmatpush1.xpose.msra.mxu0 %v77
    %141 = vmatprep.subr.mxu0 0.0
    %142 = vmatpush1.xpose.msra.mxu0 %v74
    %143 = vmatprep.subr.mxu0 0.0
    %144 = vmatpush1.xpose.msra.mxu0 %v71
    %145 = vmatprep.subr.mxu0 0.0
    %146 = vmatpush1.xpose.msra.mxu0 %v68
    %147 = vmatprep.subr.mxu0 0.0
    %148 = vmatpush2.xpose.msra.mxu0 0.0
    %149 = vmatprep.subr.mxu0 0.0
    %150 = vmatpush2.xpose.msra.mxu0 0.0
    %151 = vmatprep.subr.mxu0 0.0
    %152 = vmatpush2.xpose.msra.mxu0 0.0
    %153 = vmatprep.subr.mxu0 0.0
    %154 = vmatpush2.xpose.msra.mxu0 0.0
    %155 = vmatprep.subr.mxu0 0.0
    %156 = vmatpush2.xpose.msra.mxu0 0.0
    %157 = vmatprep.subr.mxu0 0.0
    %158 = vmatpush2.xpose.msra.mxu0 0.0
    %159 = vmatprep.subr.mxu0 0.0
    %160 = vmatpush2.xpose.msra.mxu0 0.0
    %161 = vmatprep.subr.mxu0 0.0
    %162 = vmatpush2.xpose.msra.mxu0 0.0
    %163 = vmatprep.subr.mxu0 0.0
    %164 = vmatpush2.xpose.msra.mxu0 0.0
    %165 = vmatprep.subr.mxu0 0.0
    %166 = vmatpush2.xpose.msra.mxu0 0.0
    %167 = vmatprep.subr.mxu0 0.0
    %168 = vmatpush2.xpose.msra.mxu0 0.0
    %169 = vmatprep.subr.mxu0 0.0
    %170 = vmatpush2.xpose.msra.mxu0 0.0
    %171 = vmatprep.subr.mxu0 0.0
    %172 = vmatpush2.xpose.msra.mxu0 0.0
    %173 = vmatprep.subr.mxu0 0.0
    %174 = vmatpush2.xpose.msra.mxu0 0.0
    %175 = vmatprep.subr.mxu0 0.0
    %176 = vmatpush2.xpose.msra.mxu0 0.0
    %177 = vmatprep.subr.mxu0 0.0
    %178 = vmatpush2.xpose.msra.mxu0 0.0
    %179 = vmatprep.mubr.f32.mxu0 0.0
    %180 = vmatmul.mubr.f32.gmra.mxu0 %v44
    %v181 = vpop.f32.mrf.mxu0
    %v182 = vadd.f32 0.0, %v181
    %v183 = vpop.f32.mrf.mxu0
    %184 = vmatprep.mubr.f32.mxu0 0.0
    %185 = vmatmul.mubr.f32.gmra.mxu0 %v47
    %v186 = vpop.f32.mrf.mxu0
    %v187 = vadd.f32 0.0, %v186
    %v188 = vpop.f32.mrf.mxu0
    %189 = vmatprep.mubr.f32.mxu0 0.0
    %190 = vmatmul.mubr.f32.gmra.mxu0 %v50
    %v191 = vpop.f32.mrf.mxu0
    %v192 = vadd.f32 0.0, %v191
    %v193 = vpop.f32.mrf.mxu0
    %194 = vmatprep.mubr.f32.mxu0 0.0
    %195 = vmatmul.mubr.f32.gmra.mxu0 %v53
    %v196 = vpop.f32.mrf.mxu0
    %v197 = vadd.f32 0.0, %v196
    %v198 = vpop.f32.mrf.mxu0
    %199 = vmatprep.mubr.f32.mxu0 0.0
    %200 = vmatmul.mubr.f32.gmra.mxu0 %v56
    %v201 = vpop.f32.mrf.mxu0
    %v202 = vadd.f32 0.0, %v201
    %v203 = vpop.f32.mrf.mxu0
    %204 = vmatprep.mubr.f32.mxu0 0.0
    %205 = vmatmul.mubr.f32.gmra.mxu0 %v59
    %v206 = vpop.f32.mrf.mxu0
    %v207 = vadd.f32 0.0, %v206
    %v208 = vpop.f32.mrf.mxu0
    %209 = vmatprep.mubr.f32.mxu0 0.0
    %210 = vmatmul.mubr.f32.gmra.mxu0 %v62
    %v211 = vpop.f32.mrf.mxu0
    %v212 = vadd.f32 0.0, %v211
    %v213 = vpop.f32.mrf.mxu0
    %214 = vmatprep.mubr.f32.mxu0 0.0
    %215 = vmatmul.mubr.f32.gmra.mxu0 %v65
    %v216 = vpop.f32.mrf.mxu0
    %v217 = vadd.f32 0.0, %v216
    %v218 = vpop.f32.mrf.mxu0
    %219 = vdwg.mxu0
    %v220 = vmul.f32 %v182, 0.44444445
    %v221 = vmul.f32 %v187, 0.44444445
    %v222 = vmul.f32 %v192, 0.44444445
    %v223 = vmul.f32 %v197, 0.44444445
    %v224 = vmul.f32 %v202, 0.44444445
    %v225 = vmul.f32 %v207, 0.44444445
    %v226 = vmul.f32 %v212, 0.44444445
    %v227 = vmul.f32 %v217, 0.44444445
    %v228 = vld [vmem:[%s2] sm:$0xff]
    %v229 = vld [vmem:[%s2 + $0x8] sm:$0xff]
    %v230 = vld [vmem:[%s2 + $0x10] sm:$0xff]
    %v231 = vld [vmem:[%s2 + $0x18] sm:$0xff]
    %v232 = vld [vmem:[%s2 + $0x20] sm:$0xff]
    %v233 = vld [vmem:[%s2 + $0x28] sm:$0xff]
    %v234 = vld [vmem:[%s2 + $0x30] sm:$0xff]
    %v235 = vld [vmem:[%s2 + $0x38] sm:$0xff]
    %237 = vset.pattern.permute.xlu0 0
    %238 = vperm.xlu0 %237, %v228
    %v239 = vpop.permute.xlu0 %238
    %242 = vset.pattern.permute.xlu0 0
    %243 = vperm.xlu0 %242, %v229
    %v244 = vpop.permute.xlu0 %243
    %247 = vset.pattern.permute.xlu0 0
    %248 = vperm.xlu0 %247, %v230
    %v249 = vpop.permute.xlu0 %248
    %252 = vset.pattern.permute.xlu0 0
    %253 = vperm.xlu0 %252, %v231
    %v254 = vpop.permute.xlu0 %253
    %257 = vset.pattern.permute.xlu0 0
    %258 = vperm.xlu0 %257, %v232
    %v259 = vpop.permute.xlu0 %258
    %262 = vset.pattern.permute.xlu0 0
    %263 = vperm.xlu0 %262, %v233
    %v264 = vpop.permute.xlu0 %263
    %267 = vset.pattern.permute.xlu0 0
    %268 = vperm.xlu0 %267, %v234
    %v269 = vpop.permute.xlu0 %268
    %272 = vset.pattern.permute.xlu0 0
    %273 = vperm.xlu0 %272, %v235
    %v274 = vpop.permute.xlu0 %273
    %v276 = vsub.f32 %v220, %v239
    %v277 = vsub.f32 %v221, %v244
    %v278 = vsub.f32 %v222, %v249
    %v279 = vsub.f32 %v223, %v254
    %v280 = vsub.f32 %v224, %v259
    %v281 = vsub.f32 %v225, %v264
    %v282 = vsub.f32 %v226, %v269
    %v283 = vsub.f32 %v227, %v274
    %v284 = vld [vmem:[%s3] sm:$0x1]
    %v286 = vlaneseq
    %v287 = vshrl.u32 %v286, 7
    %v288 = vsub.s32 0, %v287
    %v289 = vrot.slane %v284, %v288
    %v291 = vsub.f32 %v276, %v289
    %v292 = vsub.f32 %v277, %v289
    %v293 = vsub.f32 %v278, %v289
    %v294 = vsub.f32 %v279, %v289
    %v295 = vsub.f32 %v280, %v289
    %v296 = vsub.f32 %v281, %v289
    %v297 = vsub.f32 %v282, %v289
    %v298 = vsub.f32 %v283, %v289
    %v299 = vmul.f32 %v291, 1.442695
    %v300 = vpow.pop %v299
    %v301 = vmul.f32 %v292, 1.442695
    %v302 = vpow.pop %v301
    %v303 = vmul.f32 %v293, 1.442695
    %v304 = vpow.pop %v303
    %v305 = vmul.f32 %v294, 1.442695
    %v306 = vpow.pop %v305
    %v307 = vmul.f32 %v295, 1.442695
    %v308 = vpow.pop %v307
    %v309 = vmul.f32 %v296, 1.442695
    %v310 = vpow.pop %v309
    %v311 = vmul.f32 %v297, 1.442695
    %v312 = vpow.pop %v311
    %v313 = vmul.f32 %v298, 1.442695
    %v314 = vpow.pop %v313
    %315 = vst [vmem:[#allocation2] sm:$0xff] %v300
    %316 = vst [vmem:[#allocation2 + $0x8] sm:$0xff] %v302
    %317 = vst [vmem:[#allocation2 + $0x10] sm:$0xff] %v304
    %318 = vst [vmem:[#allocation2 + $0x18] sm:$0xff] %v306
    %319 = vst [vmem:[#allocation2 + $0x20] sm:$0xff] %v308
    %320 = vst [vmem:[#allocation2 + $0x28] sm:$0xff] %v310
    %321 = vst [vmem:[#allocation2 + $0x30] sm:$0xff] %v312
    %322 = vst [vmem:[#allocation2 + $0x38] sm:$0xff] %v314
    // Predicated region
    $region18: #{tpu_custom_call.1} parent=1 // pred_check
      _
    $region19: #{tpu_custom_call.1} parent=1 // pred_check_branch
      %324 = sbr.rel (0) target = $region21
    $region20: #{tpu_custom_call.1} parent=1 // pred_region
      %s326 = ssub.s32 1024, 1024
      %327 = vsyncadd [#allocation3], %s326
      %s328 = sshll.u32 [#allocation2], 4
      %s329 = int_to_ptr.vmem [resolvable:$true] %s328
      %334 = dma.vmem_to_hbm [thread:$0]  %s329, 1024, %s4, [#allocation3], 128, 128, 8
    $region21: #{tpu_custom_call.1} parent=1 // pred_fallthru
      _
    // Predicated region
    $region22: #{tpu_custom_call.1} parent=1 // pred_check
      _
    $region23: #{tpu_custom_call.1} parent=1 // pred_check_branch
      %336 = sbr.rel (0) target = $region25
    $region24: #{tpu_custom_call.1} parent=1 // pred_region
      %337 = dma.done [#allocation3], 1024
    $region25: #{tpu_custom_call.1} parent=1 // pred_fallthru
      _
    %338 = vsyncpa [#allocation3], 1

</llo_original>
